<compile_context>
chip_gen: v7x
topology: tpu7x:2x2x1
jax: 0.10.0
libtpu: 0.0.40
codegen_flags: <defaults>
</compile_context>

<pallas_src>
import functools

import jax
import jax.numpy as jnp
from jax.experimental import pallas as pl
from jax.experimental.pallas import tpu as pltpu


def _layernorm_cf_kernel(x_ref, w_ref, b_ref, o_ref, *, eps: float, c: int):
    # x_ref: (TN, C, TL) tile; normalize over axis 1 (channels) per (n, l).
    # w_ref / b_ref: (C, 1), resident across all grid steps.
    x = x_ref[...].astype(jnp.float32)                        # (TN, C, TL)

    inv_c = jnp.float32(1.0 / c)
    mean = jnp.sum(x, axis=1, keepdims=True) * inv_c          # (TN, 1, TL)
    xc = x - mean
    var = jnp.sum(xc * xc, axis=1, keepdims=True) * inv_c     # (TN, 1, TL), two-pass
    scale = jax.lax.rsqrt(var + jnp.float32(eps))             # EUP rsqrt

    w = w_ref[...].astype(jnp.float32)                        # (C, 1) -> broadcasts
    b = b_ref[...].astype(jnp.float32)                        # (C, 1) -> broadcasts
    o_ref[...] = (xc * scale * w + b).astype(o_ref.dtype)


def _round_up(v: int, m: int) -> int:
    return ((v + m - 1) // m) * m


def layernorm_channel_first(x, weight, bias, eps: float = 1e-6,
                            target_block_bytes: int = 2 * 1024 * 1024):
    """Channel-first LayerNorm matching the PyTorch module.

    x:      (N, C, L)
    weight: (C,)
    bias:   (C,)
    """
    N, C, L = x.shape
    elem = jnp.dtype(x.dtype).itemsize

    # --- Lane (L) tile -----------------------------------------------------
    # As many 128-lane groups as fit ~target_block_bytes for a (C, tl) slab;
    # split L evenly across tiles so the last tile isn't nearly empty.  A
    # full-extent block (tl == L) is exempt from the multiple-of-128 rule.
    bytes_per_lane = max(1, C * elem)
    max_lanes = max(128, (target_block_bytes // bytes_per_lane) // 128 * 128)
    if L <= max_lanes:
        tl = L
    else:
        num_l = pl.cdiv(L, max_lanes)
        tl = min(_round_up(pl.cdiv(L, num_l), 128), L)
    num_l = pl.cdiv(L, tl)

    # --- Batch (N) tile ----------------------------------------------------
    # Pack several batch elements per grid step when a single (C, tl) slab is
    # small, to amortize the fixed per-step overhead.
    slab_bytes = max(1, C * tl * elem)
    tn = max(1, min(N, target_block_bytes // slab_bytes))
    num_n = pl.cdiv(N, tn)
    tn = pl.cdiv(N, num_n)            # balance blocks across N
    num_n = pl.cdiv(N, tn)

    w2 = weight.reshape(C, 1)
    b2 = bias.reshape(C, 1)

    kernel = functools.partial(_layernorm_cf_kernel, eps=eps, c=C)

    return pl.pallas_call(
        kernel,
        out_shape=jax.ShapeDtypeStruct((N, C, L), x.dtype),
        grid_spec=pltpu.PrefetchScalarGridSpec(
            num_scalar_prefetch=0,
            grid=(num_n, num_l),
            in_specs=[
                # x: one (TN, C, TL) tile per grid step.
                pl.BlockSpec((tn, C, tl), lambda n, l: (n, 0, l)),
                # weight / bias: full (C, 1) arrays, resident across all steps.
                pl.BlockSpec((C, 1), lambda n, l: (0, 0)),
                pl.BlockSpec((C, 1), lambda n, l: (0, 0)),
            ],
            out_specs=pl.BlockSpec((tn, C, tl), lambda n, l: (n, 0, l)),
        ),
        compiler_params=pltpu.CompilerParams(
            dimension_semantics=("parallel", "parallel"),
            vmem_limit_bytes=32 * 1024 * 1024,
        ),
    )(x, w2, b2)


def _reference(x, weight, bias, eps=1e-6):
    x32 = x.astype(jnp.float32)
    u = jnp.mean(x32, axis=1, keepdims=True)
    s = jnp.mean((x32 - u) ** 2, axis=1, keepdims=True)
    xn = (x32 - u) / jnp.sqrt(s + eps)
    return weight.astype(jnp.float32)[None, :, None] * xn \
        + bias.astype(jnp.float32)[None, :, None]


def _params(c, dtype):
    w = (jnp.ones((c,), jnp.float32) + 0.01 * jnp.arange(c, dtype=jnp.float32))
    b = (jnp.zeros((c,), jnp.float32) - 0.02 * jnp.arange(c, dtype=jnp.float32))
    return w.astype(dtype), b.astype(dtype)


if __name__ == "__main__":
    key = jax.random.PRNGKey(0)
    k1, k2, k3 = jax.random.split(key, 3)

    # --- Test 1: f32, single-tile path, offset mean (stresses variance path).
    N, C, L = 2, 32, 128
    x = jax.random.normal(k1, (N, C, L), dtype=jnp.float32) * 2.0 + 3.0
    w, b = _params(C, jnp.float32)
    out = jax.block_until_ready(layernorm_channel_first(x, w, b, eps=1e-6))
    ref = _reference(x, w, b, eps=1e-6)
    assert out.shape == ref.shape and out.dtype == jnp.float32
    assert jnp.max(jnp.abs(out.astype(jnp.float32) - ref)) < 1e-4, "test1 mismatch"

    # --- Test 2: f32, forced multi-tile grid (ragged last L tile, N untiled).
    N, C, L = 3, 16, 384
    x = jax.random.normal(k2, (N, C, L), dtype=jnp.float32)
    w, b = _params(C, jnp.float32)
    out = jax.block_until_ready(
        layernorm_channel_first(x, w, b, eps=1e-6, target_block_bytes=16 * 1024))
    ref = _reference(x, w, b, eps=1e-6)
    assert jnp.max(jnp.abs(out.astype(jnp.float32) - ref)) < 1e-4, "test2 mismatch"

    # --- Test 3: bf16 I/O, batched-N blocking with ragged last N block.
    N, C, L = 3, 32, 256
    x = (jax.random.normal(k3, (N, C, L), dtype=jnp.float32) + 1.5).astype(jnp.bfloat16)
    w, b = _params(C, jnp.bfloat16)
    out = jax.block_until_ready(
        layernorm_channel_first(x, w, b, eps=1e-6, target_block_bytes=32 * 1024))
    ref = _reference(x, w, b, eps=1e-6)
    assert out.dtype == jnp.bfloat16
    assert jnp.max(jnp.abs(out.astype(jnp.float32) - ref)) < 3e-2, "test3 mismatch"

    print("KERNEL_OK")
</pallas_src>

<mosaic_0001>
module attributes {stable_mosaic.version = 11 : i64} {
  func.func @_layernorm_cf_kernel(%arg0: i32, %arg1: i32, %arg2: memref<2x32x128xf32, #tpu.memory_space<vmem>>, %arg3: memref<32x1xf32, #tpu.memory_space<vmem>>, %arg4: memref<32x1xf32, #tpu.memory_space<vmem>>, %arg5: memref<2x32x128xf32, #tpu.memory_space<vmem>>) attributes {dimension_semantics = [#tpu.dimension_semantics<parallel>, #tpu.dimension_semantics<parallel>], iteration_bounds = array<i64: 1, 1>, scalar_prefetch = 0 : i64, scratch_operands = 0 : i64, tpu.core_type = #tpu.core_type<tc>, window_params = [{transform_indices = @transform_0, window_bounds = array<i64: 2, 32, 128>}, {pipeline_mode = #tpu.pipeline_mode<synchronous>, transform_indices = @transform_1, window_bounds = array<i64: 32, 1>}, {pipeline_mode = #tpu.pipeline_mode<synchronous>, transform_indices = @transform_2, window_bounds = array<i64: 32, 1>}, {transform_indices = @transform_3, window_bounds = array<i64: 2, 32, 128>}]} {
    %c0 = arith.constant 0 : index
    %c0_0 = arith.constant 0 : index
    %c0_1 = arith.constant 0 : index
    %0 = vector.load %arg2[%c0, %c0_0, %c0_1] : memref<2x32x128xf32, #tpu.memory_space<vmem>>, vector<2x32x128xf32>
    %cst = arith.constant dense<0.000000e+00> : vector<2x128xf32>
    %1 = vector.multi_reduction <add>, %0, %cst [1] : vector<2x32x128xf32> to vector<2x128xf32>
    %2 = vector.shape_cast %1 : vector<2x128xf32> to vector<2x1x128xf32>
    %cst_2 = arith.constant 3.125000e-02 : f32
    %3 = vector.broadcast %cst_2 : f32 to vector<2x1x128xf32>
    %4 = arith.mulf %2, %3 : vector<2x1x128xf32>
    %5 = vector.broadcast %4 : vector<2x1x128xf32> to vector<2x32x128xf32>
    %6 = arith.subf %0, %5 : vector<2x32x128xf32>
    %7 = arith.mulf %6, %6 : vector<2x32x128xf32>
    %cst_3 = arith.constant dense<0.000000e+00> : vector<2x128xf32>
    %8 = vector.multi_reduction <add>, %7, %cst_3 [1] : vector<2x32x128xf32> to vector<2x128xf32>
    %9 = vector.shape_cast %8 : vector<2x128xf32> to vector<2x1x128xf32>
    %cst_4 = arith.constant 3.125000e-02 : f32
    %10 = vector.broadcast %cst_4 : f32 to vector<2x1x128xf32>
    %11 = arith.mulf %9, %10 : vector<2x1x128xf32>
    %cst_5 = arith.constant 9.99999997E-7 : f32
    %12 = vector.broadcast %cst_5 : f32 to vector<2x1x128xf32>
    %13 = arith.addf %11, %12 : vector<2x1x128xf32>
    %14 = math.rsqrt %13 : vector<2x1x128xf32>
    %c0_6 = arith.constant 0 : index
    %c0_7 = arith.constant 0 : index
    %15 = vector.load %arg3[%c0_6, %c0_7] : memref<32x1xf32, #tpu.memory_space<vmem>>, vector<32x1xf32>
    %c0_8 = arith.constant 0 : index
    %c0_9 = arith.constant 0 : index
    %16 = vector.load %arg4[%c0_8, %c0_9] : memref<32x1xf32, #tpu.memory_space<vmem>>, vector<32x1xf32>
    %17 = vector.broadcast %14 : vector<2x1x128xf32> to vector<2x32x128xf32>
    %18 = arith.mulf %6, %17 : vector<2x32x128xf32>
    %19 = vector.shape_cast %15 : vector<32x1xf32> to vector<1x32x1xf32>
    %20 = vector.broadcast %19 : vector<1x32x1xf32> to vector<2x32x128xf32>
    %21 = arith.mulf %18, %20 : vector<2x32x128xf32>
    %22 = vector.shape_cast %16 : vector<32x1xf32> to vector<1x32x1xf32>
    %23 = vector.broadcast %22 : vector<1x32x1xf32> to vector<2x32x128xf32>
    %24 = arith.addf %21, %23 : vector<2x32x128xf32>
    %c0_10 = arith.constant 0 : index
    %c0_11 = arith.constant 0 : index
    %c0_12 = arith.constant 0 : index
    %25 = vector.load %arg5[%c0_10, %c0_11, %c0_12] : memref<2x32x128xf32, #tpu.memory_space<vmem>>, vector<2x32x128xf32>
    tpu.vector_store %arg5[%c0_10, %c0_11, %c0_12], %24 {strides = array<i32>} : memref<2x32x128xf32, #tpu.memory_space<vmem>>, vector<2x32x128xf32>,
    return
  }
  func.func @transform_0(%arg0: i32, %arg1: i32) -> (i32, i32, i32) {
    %c0_i32 = arith.constant 0 : i32
    %c0_i32_0 = arith.constant 0 : i32
    return %arg0, %c0_i32, %arg1 : i32, i32, i32
  }
  func.func @transform_1(%arg0: i32, %arg1: i32) -> (i32, i32) {
    %c0_i32 = arith.constant 0 : i32
    %c0_i32_0 = arith.constant 0 : i32
    %c0_i32_1 = arith.constant 0 : i32
    return %c0_i32, %c0_i32_0 : i32, i32
  }
  func.func @transform_2(%arg0: i32, %arg1: i32) -> (i32, i32) {
    %c0_i32 = arith.constant 0 : i32
    %c0_i32_0 = arith.constant 0 : i32
    %c0_i32_1 = arith.constant 0 : i32
    return %c0_i32, %c0_i32_0 : i32, i32
  }
  func.func @transform_3(%arg0: i32, %arg1: i32) -> (i32, i32, i32) {
    %c0_i32 = arith.constant 0 : i32
    %c0_i32_0 = arith.constant 0 : i32
    return %arg0, %c0_i32, %arg1 : i32, i32, i32
  }
}

</mosaic_0001>

<llo_original>
// kernel: tpu_custom_call.1
$region0: #{tpu_custom_call.1}
  #allocation0 [shape = 'u32[]', space=smem, size = 0x4, offset = 0x4, fixed_abs, tag = 'smem constant byte address 0x4 - core index']
  #allocation1 [shape = 'u32[144,128]{1,0:T(1,128)}', space=vmem, size = 0x12000, scoped, tag = 'internal scratch']
  %s0 = inlined_call_operand.vmem [shape: f32[2,32,128], index: 0, kind: input, shape index: {}]
  %s1 = inlined_call_operand.vmem [shape: f32[32,1], index: 1, kind: input, shape index: {}]
  %s2 = inlined_call_operand.vmem [shape: f32[32,1], index: 2, kind: input, shape index: {}]
  %s3 = inlined_call_operand.hbm [shape: f32[2,32,128], index: 3, kind: output, shape index: {}]
  %s4 = sld [smem:[#allocation0]]
  $region22: #{tpu_custom_call.1} parent=0
    _
  %s6 = ssub.s32 1, %s4
  %s7 = scalar_select 0, %s6, %s4
  $region1: #{tpu_custom_call.1} parent=0
    #allocation2 [shape = 'u8[32768]{0}', space=vmem, size = 0x8000, scoped, tag = 'output window, operand 0, single buffered']
    #allocation3 [shape = 's32[1]{0}', space=sflag, size = 0x4, scoped, tag = 'scoped memory for tpu_custom_call.1']
    %8 = vsyncpa [#allocation3], 0
    // Predicated region
    $region2: #{tpu_custom_call.1} parent=1 // pred_check
      _
    $region3: #{tpu_custom_call.1} parent=1 // pred_check_branch
      %10 = sbr.rel (0) target = $region5
    $region4: #{tpu_custom_call.1} parent=1 // pred_region
      _
    $region5: #{tpu_custom_call.1} parent=1 // pred_fallthru
      _
    // Predicated region
    $region6: #{tpu_custom_call.1} parent=1 // pred_check
      _
    $region7: #{tpu_custom_call.1} parent=1 // pred_check_branch
      %12 = sbr.rel (0) target = $region9
    $region8: #{tpu_custom_call.1} parent=1 // pred_region
      _
    $region9: #{tpu_custom_call.1} parent=1 // pred_fallthru
      _
    // Predicated region
    $region10: #{tpu_custom_call.1} parent=1 // pred_check
      _
    $region11: #{tpu_custom_call.1} parent=1 // pred_check_branch
      %14 = sbr.rel (0) target = $region13
    $region12: #{tpu_custom_call.1} parent=1 // pred_region
      _
    $region13: #{tpu_custom_call.1} parent=1 // pred_fallthru
      _
    %v15 = vld [vmem:[%s0] sm:$0xff]
    %v16 = vld [vmem:[%s0 + $0x8] sm:$0xff]
    %v17 = vld [vmem:[%s0 + $0x10] sm:$0xff]
    %v18 = vld [vmem:[%s0 + $0x18] sm:$0xff]
    %v19 = vld [vmem:[%s0 + $0x20] sm:$0xff]
    %v20 = vld [vmem:[%s0 + $0x28] sm:$0xff]
    %v21 = vld [vmem:[%s0 + $0x30] sm:$0xff]
    %v22 = vld [vmem:[%s0 + $0x38] sm:$0xff]
    %v23 = vadd.f32 %v15, %v16
    %v24 = vadd.f32 %v23, %v17
    %v25 = vadd.f32 %v24, %v18
    %v26 = vrot.slane %v25, 4
    %v27 = vadd.f32 %v25, %v26
    %v28 = vrot.slane %v27, 2
    %v29 = vadd.f32 %v27, %v28
    %v30 = vrot.slane %v29, 1
    %v31 = vadd.f32 %v29, %v30
    %v32 = vadd.f32 %v19, %v20
    %v33 = vadd.f32 %v32, %v21
    %v34 = vadd.f32 %v33, %v22
    %v35 = vrot.slane %v34, 4
    %v36 = vadd.f32 %v34, %v35
    %v37 = vrot.slane %v36, 2
    %v38 = vadd.f32 %v36, %v37
    %v39 = vrot.slane %v38, 1
    %v40 = vadd.f32 %v38, %v39
    %v41 = vmul.f32 %v31, 0.03125
    %v42 = vmul.f32 %v40, 0.03125
    %v43 = vsub.f32 %v15, %v41
    %v44 = vsub.f32 %v16, %v41
    %v45 = vsub.f32 %v17, %v41
    %v46 = vsub.f32 %v18, %v41
    %v47 = vsub.f32 %v19, %v42
    %v48 = vsub.f32 %v20, %v42
    %v49 = vsub.f32 %v21, %v42
    %v50 = vsub.f32 %v22, %v42
    %v51 = vmul.f32 %v43, %v43
    %v52 = vmul.f32 %v44, %v44
    %v53 = vmul.f32 %v45, %v45
    %v54 = vmul.f32 %v46, %v46
    %v55 = vmul.f32 %v47, %v47
    %v56 = vmul.f32 %v48, %v48
    %v57 = vmul.f32 %v49, %v49
    %v58 = vmul.f32 %v50, %v50
    %v59 = vadd.f32 %v51, %v52
    %v60 = vadd.f32 %v59, %v53
    %v61 = vadd.f32 %v60, %v54
    %v62 = vrot.slane %v61, 4
    %v63 = vadd.f32 %v61, %v62
    %v64 = vrot.slane %v63, 2
    %v65 = vadd.f32 %v63, %v64
    %v66 = vrot.slane %v65, 1
    %v67 = vadd.f32 %v65, %v66
    %v68 = vadd.f32 %v55, %v56
    %v69 = vadd.f32 %v68, %v57
    %v70 = vadd.f32 %v69, %v58
    %v71 = vrot.slane %v70, 4
    %v72 = vadd.f32 %v70, %v71
    %v73 = vrot.slane %v72, 2
    %v74 = vadd.f32 %v72, %v73
    %v75 = vrot.slane %v74, 1
    %v76 = vadd.f32 %v74, %v75
    %v77 = vmul.f32 %v67, 0.03125
    %v78 = vmul.f32 %v76, 0.03125
    %v79 = vadd.f32 %v77, 1e-06
    %v80 = vadd.f32 %v78, 1e-06
    %v81 = vrsqrt.pop %v79
    %v82 = vrsqrt.pop %v80
    %v83 = vld [vmem:[%s1] sm:$0xff]
    %v84 = vld [vmem:[%s1 + $0x8] sm:$0xff]
    %v85 = vld [vmem:[%s1 + $0x10] sm:$0xff]
    %v86 = vld [vmem:[%s1 + $0x18] sm:$0xff]
    %v87 = vld [vmem:[%s2] sm:$0xff]
    %v88 = vld [vmem:[%s2 + $0x8] sm:$0xff]
    %v89 = vld [vmem:[%s2 + $0x10] sm:$0xff]
    %v90 = vld [vmem:[%s2 + $0x18] sm:$0xff]
    %v91 = vmul.f32 %v43, %v81
    %v92 = vmul.f32 %v44, %v81
    %v93 = vmul.f32 %v45, %v81
    %v94 = vmul.f32 %v46, %v81
    %v95 = vmul.f32 %v47, %v82
    %v96 = vmul.f32 %v48, %v82
    %v97 = vmul.f32 %v49, %v82
    %v98 = vmul.f32 %v50, %v82
    %100 = vset.pattern.permute.xlu0 0
    %101 = vperm.xlu0 %100, %v83
    %v102 = vpop.permute.xlu0 %101
    %105 = vset.pattern.permute.xlu0 0
    %106 = vperm.xlu0 %105, %v84
    %v107 = vpop.permute.xlu0 %106
    %110 = vset.pattern.permute.xlu0 0
    %111 = vperm.xlu0 %110, %v85
    %v112 = vpop.permute.xlu0 %111
    %115 = vset.pattern.permute.xlu0 0
    %116 = vperm.xlu0 %115, %v86
    %v117 = vpop.permute.xlu0 %116
    %v119 = vmul.f32 %v91, %v102
    %v120 = vmul.f32 %v92, %v107
    %v121 = vmul.f32 %v93, %v112
    %v122 = vmul.f32 %v94, %v117
    %v123 = vmul.f32 %v95, %v102
    %v124 = vmul.f32 %v96, %v107
    %v125 = vmul.f32 %v97, %v112
    %v126 = vmul.f32 %v98, %v117
    %128 = vset.pattern.permute.xlu0 0
    %129 = vperm.xlu0 %128, %v87
    %v130 = vpop.permute.xlu0 %129
    %133 = vset.pattern.permute.xlu0 0
    %134 = vperm.xlu0 %133, %v88
    %v135 = vpop.permute.xlu0 %134
    %138 = vset.pattern.permute.xlu0 0
    %139 = vperm.xlu0 %138, %v89
    %v140 = vpop.permute.xlu0 %139
    %143 = vset.pattern.permute.xlu0 0
    %144 = vperm.xlu0 %143, %v90
    %v145 = vpop.permute.xlu0 %144
    %v147 = vadd.f32 %v119, %v130
    %v148 = vadd.f32 %v120, %v135
    %v149 = vadd.f32 %v121, %v140
    %v150 = vadd.f32 %v122, %v145
    %v151 = vadd.f32 %v123, %v130
    %v152 = vadd.f32 %v124, %v135
    %v153 = vadd.f32 %v125, %v140
    %v154 = vadd.f32 %v126, %v145
    %155 = vst [vmem:[#allocation2] sm:$0xff] %v147
    %156 = vst [vmem:[#allocation2 + $0x8] sm:$0xff] %v148
    %157 = vst [vmem:[#allocation2 + $0x10] sm:$0xff] %v149
    %158 = vst [vmem:[#allocation2 + $0x18] sm:$0xff] %v150
    %159 = vst [vmem:[#allocation2 + $0x20] sm:$0xff] %v151
    %160 = vst [vmem:[#allocation2 + $0x28] sm:$0xff] %v152
    %161 = vst [vmem:[#allocation2 + $0x30] sm:$0xff] %v153
    %162 = vst [vmem:[#allocation2 + $0x38] sm:$0xff] %v154
    // Predicated region
    $region14: #{tpu_custom_call.1} parent=1 // pred_check
      _
    $region15: #{tpu_custom_call.1} parent=1 // pred_check_branch
      %164 = sbr.rel (0) target = $region17
    $region16: #{tpu_custom_call.1} parent=1 // pred_region
      %s166 = ssub.s32 1024, 1024
      %167 = vsyncadd [#allocation3], %s166
      %s168 = sshll.u32 [#allocation2], 4
      %s169 = int_to_ptr.vmem [resolvable:$true] %s168
      %174 = dma.vmem_to_hbm [thread:$0]  %s169, 1024, %s3, [#allocation3], 128, 128, 8
    $region17: #{tpu_custom_call.1} parent=1 // pred_fallthru
      _
    // Predicated region
    $region18: #{tpu_custom_call.1} parent=1 // pred_check
      _
    $region19: #{tpu_custom_call.1} parent=1 // pred_check_branch
      %176 = sbr.rel (0) target = $region21
    $region20: #{tpu_custom_call.1} parent=1 // pred_region
      %177 = dma.done [#allocation3], 1024
    $region21: #{tpu_custom_call.1} parent=1 // pred_fallthru
      _
    %178 = vsyncpa [#allocation3], 1

</llo_original>
